<compile_context>
chip_gen: v6e
topology: v6e:2x2x1
jax: 0.10.0
libtpu: 0.0.40
codegen_flags: <defaults>
</compile_context>

<pallas_src>
import jax
import jax.numpy as jnp
from jax.experimental import pallas as pl
from jax.experimental.pallas import tpu as pltpu


def _round_up(x, m):
    return ((x + m - 1) // m) * m


def soft_prompt_kernel(seq_ref, x_ref, wd_ref, bd_ref, wu_ref, bu_ref, out_ref):
    """One grid step: one batch row `b`, one lane tile `j` of the P*H output.

    seq_ref: SMEM int32[B]   (scalar-prefetched; consumed by the index_maps)
    x_ref:   VMEM [1, 1, H]  gathered token row hidden_states[b, seq[b], :]
    wd_ref:  VMEM [H, D]     (resident)      bd_ref: VMEM f32[1, D]  (resident)
    wu_ref:  VMEM [D, TN]    (streamed once) bu_ref: VMEM f32[1, TN] (streamed)
    out_ref: VMEM [1, 1, TN]
    """
    del seq_ref  # only used by the index_maps (DMA-level gather)

    x = x_ref[0]                                                  # [1, H]

    # proj_down (MXU, f32 accumulate) + bias + ReLU in f32 on the VPU.
    h = jnp.dot(x, wd_ref[...], preferred_element_type=jnp.float32)
    h = jnp.maximum(h + bd_ref[...], 0.0)                         # [1, D] f32

    # proj_up for this lane tile (MXU, f32 accumulate) + bias in f32.
    o = jnp.dot(h.astype(wu_ref.dtype), wu_ref[...],
                preferred_element_type=jnp.float32)
    o = o + bu_ref[...]                                           # [1, TN] f32

    # TODO(synk): dropout (config.embd_pdrop) is identity in eval mode; for
    # training-mode dropout use pltpu.prng_seed + pltpu.prng_random_bits here.
    out_ref[...] = o.reshape(out_ref.shape).astype(out_ref.dtype)


def soft_prompt_generator(hidden_states, seq_lengths, w_down, b_down, w_up, b_up,
                          num_prompt_tokens, *, tn=512):
    """hidden_states: [B, S, H]; weights stored pre-transposed as [in, out]."""
    B, S, H = hidden_states.shape
    D = w_down.shape[1]
    PH = w_up.shape[1]
    assert PH == num_prompt_tokens * H

    # Lane-dense output tiling: TN is a multiple of 128; pad P*H up to it.
    tn = min(_round_up(tn, 128), _round_up(PH, 128))
    PHp = _round_up(PH, tn)
    if PHp != PH:
        w_up = jnp.pad(w_up, ((0, 0), (0, PHp - PH)))
        b_up = jnp.pad(b_up, ((0, 0), (0, PHp - PH)))
    nj = PHp // tn

    # Biases kept in f32 (VPU-side math stays f32 even with bf16 weights).
    b_down = b_down.astype(jnp.float32)
    b_up = b_up.astype(jnp.float32)

    # Clamp indices like JAX gather would (PyTorch advanced indexing raises on OOB).
    seq = jnp.clip(seq_lengths.astype(jnp.int32), 0, S - 1)

    # Flatten (B, S) so the gathered axis is a leading (unconstrained) block dim;
    # this reshape is a free bitcast of the contiguous [B, S, H] layout.
    x_rows = hidden_states.reshape(B * S, 1, H)

    isz = lambda a: jnp.dtype(a.dtype).itemsize
    cost = pl.CostEstimate(
        flops=2 * B * nj * H * D + 2 * B * D * PHp,
        transcendentals=0,
        bytes_accessed=(B * H * isz(hidden_states)
                        + w_down.size * isz(w_down) + w_up.size * isz(w_up)
                        + b_down.size * 4 + b_up.size * 4
                        + B * PHp * isz(hidden_states)),
    )

    out = pl.pallas_call(
        soft_prompt_kernel,
        out_shape=jax.ShapeDtypeStruct((B, 1, PHp), hidden_states.dtype),
        grid_spec=pltpu.PrefetchScalarGridSpec(
            num_scalar_prefetch=1,
            grid=(nj, B),
            in_specs=[
                # DMA-level gather: only hidden_states[b, seq[b], :] lands in VMEM.
                pl.BlockSpec((1, 1, H), lambda j, b, seq: (b * S + seq[b], 0, 0)),
                pl.BlockSpec((H, D), lambda j, b, seq: (0, 0)),    # resident
                pl.BlockSpec((1, D), lambda j, b, seq: (0, 0)),    # resident
                pl.BlockSpec((D, tn), lambda j, b, seq: (0, j)),   # streamed once
                pl.BlockSpec((1, tn), lambda j, b, seq: (0, j)),
            ],
            out_specs=pl.BlockSpec((1, 1, tn), lambda j, b, seq: (b, 0, j)),
        ),
        compiler_params=pltpu.CompilerParams(
            dimension_semantics=("parallel", "parallel"),
            vmem_limit_bytes=32 * 1024 * 1024,
        ),
        cost_estimate=cost,
    )(seq, x_rows, w_down, b_down, w_up, b_up)

    out = out.reshape(B, PHp)[:, :PH]
    return out.reshape(B, num_prompt_tokens, H)


def reference(hidden_states, seq_lengths, w_down, b_down, w_up, b_up, P):
    """Pure-JAX f32 reference of the module's forward pass."""
    B, S, H = hidden_states.shape
    seq = jnp.clip(seq_lengths, 0, S - 1)
    x = hidden_states.astype(jnp.float32)[jnp.arange(B), seq, :]
    h = jnp.maximum(x @ w_down.astype(jnp.float32) + b_down.astype(jnp.float32)[0], 0.0)
    o = h @ w_up.astype(jnp.float32) + b_up.astype(jnp.float32)[0]
    return o.reshape(B, P, H)


if __name__ == "__main__":
    # Small config consistent with the module:
    B, S, H = 2, 8, 32          # batch, seq, hidden_size
    D = 16                      # proj_down_size
    P = 4                       # num_prompt_tokens  (P*H = 128, lane-aligned)

    key = jax.random.PRNGKey(0)
    k1, k2, k3, k4, k5, k6 = jax.random.split(key, 6)

    hidden_states = jax.random.normal(k1, (B, S, H), dtype=jnp.float32)
    seq_lengths = jax.random.randint(k2, (B,), 0, S, dtype=jnp.int32)

    # nn.Linear weights, stored pre-transposed ([in, out]) for x @ W.
    w_down = jax.random.normal(k3, (H, D), dtype=jnp.float32) * (1.0 / jnp.sqrt(H))
    b_down = jax.random.normal(k4, (1, D), dtype=jnp.float32) * 0.01
    w_up = jax.random.normal(k5, (D, P * H), dtype=jnp.float32) * (1.0 / jnp.sqrt(D))
    b_up = jax.random.normal(k6, (1, P * H), dtype=jnp.float32) * 0.01

    ref = reference(hidden_states, seq_lengths, w_down, b_down, w_up, b_up, P)

    # f32 path (exact check).
    out = soft_prompt_generator(hidden_states, seq_lengths,
                                w_down, b_down, w_up, b_up, P)
    out = jax.block_until_ready(out)
    assert out.shape == (B, P, H)
    assert jnp.allclose(out, ref, atol=1e-5, rtol=1e-5)

    # bf16 activation/weight path (halved HBM traffic, bf16 MXU, f32 accumulation,
    # biases + ReLU in f32) — loose check against the f32 reference.
    out_bf16 = soft_prompt_generator(
        hidden_states.astype(jnp.bfloat16), seq_lengths,
        w_down.astype(jnp.bfloat16), b_down,
        w_up.astype(jnp.bfloat16), b_up, P)
    out_bf16 = jax.block_until_ready(out_bf16)
    assert out_bf16.shape == (B, P, H)
    assert out_bf16.dtype == jnp.bfloat16
    assert jnp.allclose(out_bf16.astype(jnp.float32), ref, atol=1e-1, rtol=1e-1)

    print("KERNEL_OK")
</pallas_src>

<mosaic_0001>
module attributes {stable_mosaic.version = 11 : i64} {
  func.func @soft_prompt_kernel(%arg0: i32, %arg1: i32, %arg2: memref<2xi32, #tpu.memory_space<smem>>, %arg3: memref<1x1x32xf32, #tpu.memory_space<vmem>>, %arg4: memref<32x16xf32, #tpu.memory_space<vmem>>, %arg5: memref<1x16xf32, #tpu.memory_space<vmem>>, %arg6: memref<16x128xf32, #tpu.memory_space<vmem>>, %arg7: memref<1x128xf32, #tpu.memory_space<vmem>>, %arg8: memref<1x1x128xf32, #tpu.memory_space<vmem>>) attributes {dimension_semantics = [#tpu.dimension_semantics<parallel>, #tpu.dimension_semantics<parallel>], iteration_bounds = array<i64: 1, 2>, scalar_prefetch = 1 : i64, scratch_operands = 0 : i64, tpu.core_type = #tpu.core_type<tc>, window_params = [{transform_indices = @transform_0, window_bounds = array<i64: 1, 1, 32>}, {pipeline_mode = #tpu.pipeline_mode<synchronous>, transform_indices = @transform_1, window_bounds = array<i64: 32, 16>}, {pipeline_mode = #tpu.pipeline_mode<synchronous>, transform_indices = @transform_2, window_bounds = array<i64: 1, 16>}, {transform_indices = @transform_3, window_bounds = array<i64: 16, 128>}, {transform_indices = @transform_4, window_bounds = array<i64: 1, 128>}, {transform_indices = @transform_5, window_bounds = array<i64: 1, 1, 128>}]} {
    %c0 = arith.constant 0 : index
    %c0_0 = arith.constant 0 : index
    %c0_1 = arith.constant 0 : index
    %0 = vector.load %arg3[%c0, %c0_0, %c0_1] : memref<1x1x32xf32, #tpu.memory_space<vmem>>, vector<1x1x32xf32>
    %1 = vector.shape_cast %0 : vector<1x1x32xf32> to vector<1x32xf32>
    %c0_2 = arith.constant 0 : index
    %c0_3 = arith.constant 0 : index
    %2 = vector.load %arg4[%c0_2, %c0_3] : memref<32x16xf32, #tpu.memory_space<vmem>>, vector<32x16xf32>
    %cst = arith.constant dense<0.000000e+00> : vector<1x16xf32>
    %3 = tpu.matmul %1, %2, %cst {dimension_numbers = #tpu.dot_dimension_numbers<[1], [0], [0], [1], [0, 0, 1, 1], [], []>} : vector<1x32xf32>, vector<32x16xf32>, vector<1x16xf32> -> vector<1x16xf32>
    %c0_4 = arith.constant 0 : index
    %c0_5 = arith.constant 0 : index
    %4 = vector.load %arg5[%c0_4, %c0_5] : memref<1x16xf32, #tpu.memory_space<vmem>>, vector<1x16xf32>
    %5 = arith.addf %3, %4 : vector<1x16xf32>
    %cst_6 = arith.constant 0.000000e+00 : f32
    %6 = vector.broadcast %cst_6 : f32 to vector<1x16xf32>
    %7 = arith.maximumf %5, %6 : vector<1x16xf32>
    %c0_7 = arith.constant 0 : index
    %c0_8 = arith.constant 0 : index
    %8 = vector.load %arg6[%c0_7, %c0_8] : memref<16x128xf32, #tpu.memory_space<vmem>>, vector<16x128xf32>
    %cst_9 = arith.constant dense<0.000000e+00> : vector<1x128xf32>
    %9 = tpu.matmul %7, %8, %cst_9 {dimension_numbers = #tpu.dot_dimension_numbers<[1], [0], [0], [1], [0, 0, 1, 1], [], []>} : vector<1x16xf32>, vector<16x128xf32>, vector<1x128xf32> -> vector<1x128xf32>
    %c0_10 = arith.constant 0 : index
    %c0_11 = arith.constant 0 : index
    %10 = vector.load %arg7[%c0_10, %c0_11] : memref<1x128xf32, #tpu.memory_space<vmem>>, vector<1x128xf32>
    %11 = arith.addf %9, %10 : vector<1x128xf32>
    %12 = vector.shape_cast %11 : vector<1x128xf32> to vector<1x1x128xf32>
    %c0_12 = arith.constant 0 : index
    %c0_13 = arith.constant 0 : index
    %c0_14 = arith.constant 0 : index
    %13 = vector.load %arg8[%c0_12, %c0_13, %c0_14] : memref<1x1x128xf32, #tpu.memory_space<vmem>>, vector<1x1x128xf32>
    tpu.vector_store %arg8[%c0_12, %c0_13, %c0_14], %12 {strides = array<i32>} : memref<1x1x128xf32, #tpu.memory_space<vmem>>, vector<1x1x128xf32>,
    return
  }
  func.func @transform_0(%arg0: i32, %arg1: i32, %arg2: memref<2xi32, #tpu.memory_space<smem>>) -> (i32, i32, i32) {
    %c8_i32 = arith.constant 8 : i32
    %0 = arith.muli %arg1, %c8_i32 : i32
    %1 = arith.index_cast %arg1 : i32 to index
    %2 = memref.load %arg2[%1] : memref<2xi32, #tpu.memory_space<smem>>
    %3 = arith.addi %0, %2 : i32
    %c0_i32 = arith.constant 0 : i32
    %c0_i32_0 = arith.constant 0 : i32
    %c0_i32_1 = arith.constant 0 : i32
    return %3, %c0_i32, %c0_i32_0 : i32, i32, i32
  }
  func.func @transform_1(%arg0: i32, %arg1: i32, %arg2: memref<2xi32, #tpu.memory_space<smem>>) -> (i32, i32) {
    %c0_i32 = arith.constant 0 : i32
    %c0_i32_0 = arith.constant 0 : i32
    %c0_i32_1 = arith.constant 0 : i32
    return %c0_i32, %c0_i32_0 : i32, i32
  }
  func.func @transform_2(%arg0: i32, %arg1: i32, %arg2: memref<2xi32, #tpu.memory_space<smem>>) -> (i32, i32) {
    %c0_i32 = arith.constant 0 : i32
    %c0_i32_0 = arith.constant 0 : i32
    %c0_i32_1 = arith.constant 0 : i32
    return %c0_i32, %c0_i32_0 : i32, i32
  }
  func.func @transform_3(%arg0: i32, %arg1: i32, %arg2: memref<2xi32, #tpu.memory_space<smem>>) -> (i32, i32) {
    %c0_i32 = arith.constant 0 : i32
    %c0_i32_0 = arith.constant 0 : i32
    return %c0_i32, %arg0 : i32, i32
  }
  func.func @transform_4(%arg0: i32, %arg1: i32, %arg2: memref<2xi32, #tpu.memory_space<smem>>) -> (i32, i32) {
    %c0_i32 = arith.constant 0 : i32
    %c0_i32_0 = arith.constant 0 : i32
    return %c0_i32, %arg0 : i32, i32
  }
  func.func @transform_5(%arg0: i32, %arg1: i32, %arg2: memref<2xi32, #tpu.memory_space<smem>>) -> (i32, i32, i32) {
    %c0_i32 = arith.constant 0 : i32
    %c0_i32_0 = arith.constant 0 : i32
    return %arg1, %c0_i32, %arg0 : i32, i32, i32
  }
}

</mosaic_0001>

<llo_original>
// kernel: tpu_custom_call.1
$region0: #{tpu_custom_call.1}
  #allocation0 [shape = 'u32[]', space=smem, size = 0x4, offset = 0x4, fixed_abs, tag = 'smem constant byte address 0x4 - core index']
  #allocation1 [shape = 'u32[144,128]{1,0:T(1,128)}', space=vmem, size = 0x12000, scoped, tag = 'internal scratch']
  #allocation2 [shape = 's32[1]{0}', space=sflag, size = 0x4, scoped, tag = 'scoped memory for tpu_custom_call.1']
  #allocation3 [shape = 'u8[512]{0}', space=smem, size = 0x200, scoped, tag = 'prefetched SMEM operand 0']
  %s0 = inlined_call_operand.vmem [shape: s32[2], index: 0, kind: input, shape index: {}]
  %s1 = inlined_call_operand.vmem [shape: f32[16,1,32], index: 1, kind: input, shape index: {}]
  %s2 = inlined_call_operand.vmem [shape: f32[32,16], index: 2, kind: input, shape index: {}]
  %s3 = inlined_call_operand.vmem [shape: f32[1,16], index: 3, kind: input, shape index: {}]
  %s4 = inlined_call_operand.vmem [shape: f32[16,128], index: 4, kind: input, shape index: {}]
  %s5 = inlined_call_operand.vmem [shape: f32[1,128], index: 5, kind: input, shape index: {}]
  %s6 = inlined_call_operand.hbm [shape: f32[2,1,128], index: 6, kind: output, shape index: {}]
  %s7 = sld [smem:[#allocation0]]
  $region53: #{tpu_custom_call.1} parent=0
    _
  %s9 = ssub.s32 1, %s7
  %s10 = scalar_select 0, %s9, %s7
  %s11 = sshll.u32 %s0, 4
  %s12 = int_to_ptr.vmem [resolvable:$true] %s11
  %14 = dma.vmem_to_smem %s12, 16, [#allocation3], [#allocation2]
  %15 = dma.done [#allocation2], 16
  %16 = sfence
  $region1: #{tpu_custom_call.1} parent=0
    #allocation4 [shape = 'u8[1024]{0}', space=vmem, size = 0x400, scoped, tag = 'output window, operand 0']
    #allocation5 [shape = 's32[2]{0}', space=sflag, size = 0x8, scoped, tag = 'scoped memory for tpu_custom_call.1']
    %17 = vsyncpa [#allocation5], 0
    %s18 = scalar_lea.sflag [#allocation5], 1
    %19 = vsyncpa %s18, 0
    loop: start=0, step=1, limit=4
    $region2: #{tpu_custom_call.1} parent=1 // loop_pre_header
      _
    $region3: #{tpu_custom_call.1} parent=1 // loop_header
      %s21 = sphi 0, %s25
      %p22 = scmp.ge.s32.totalorder %s21, 4
      %s28 = sphi 0, %s40
      %s29 = sphi 0, %s36
      %s30 = sphi 0, %s28
      %s31 = sphi 0, %s29
      %s32 = sphi 0, %s30
      %s33 = sphi 0, %s31
      %s49 = sphi 0, %s51
      %s52 = sphi 0, %s49
      %s53 = sphi 0, %s52
      %s69 = sphi 0, %s53
      %s73 = sphi 0, %s73
      %s75 = sphi 0, %s73
      %s76 = sphi 0, %s75
      %s90 = sphi 0, %s76
      %s94 = sphi 0, %s94
      %s96 = sphi 0, %s94
      %s97 = sphi 0, %s96
      %s111 = sphi 0, %s97
      %s117 = sphi 0, %s119
      %s120 = sphi 0, %s117
      %s121 = sphi 0, %s120
      %s137 = sphi 0, %s121
      %s143 = sphi 0, %s145
      %s146 = sphi 0, %s143
      %s147 = sphi 0, %s146
      %s163 = sphi 0, %s147
      %s171 = sphi 0, %s173
      %s174 = sphi 0, %s171
      %s175 = sphi 0, %s174
      %s191 = sphi 0, %s175
    $region4: #{tpu_custom_call.1} parent=1 // loop_header_branch
      %24 = sbr.rel (%p22) target = $region8
    $region5: #{tpu_custom_call.1} parent=1 // loop_body
      %s26 = ssub.s32 %s21, 1
      %s27 = ssub.s32 %s21, 2
      %s34 = sadd.s32 1, %s29
      %p35 = scmp.ge.s32.totalorder %s34, 2
      %s36 = scalar_select %p35, 0, %s34
      %s37 = sadd.s32 1, %s28
      %s38 = scalar_select %p35, %s37, %s28
      %p39 = scmp.ge.s32.totalorder %s38, 1
      %s40 = scalar_select %p39, 0, %s38
      %s41 = smul.u32 %s29, 8
      %s42 = sld [smem:[#allocation3 + %s29]]
      %s43 = sadd.s32 %s41, %s42
      %s44 = smul.u32 %s36, 8
      %s45 = sld [smem:[#allocation3 + %s36]]
      %s46 = sadd.s32 %s44, %s45
      %s47 = ssub.s32 %s43, %s46
      %p48 = scmp.eq.s32.totalorder %s47, 0
      %s50 = sadd.s32 %s49, 1
      %s51 = scalar_select %p48, %s49, %s50
      %p54 = pneg %p48
      %p55 = scmp.eq.s32.totalorder %s21, 1
      %p56 = por %p54, %p55
      %p57 = scmp.ne.s32.totalorder %s49, %s52
      %p58 = scmp.eq.s32.totalorder %s21, 0
      %p59 = por %p57, %p58
      %p60 = scmp.ne.s32.totalorder %s49, %s52
      %p61 = scmp.eq.s32.totalorder %s26, 1
      %p62 = por %p60, %p61
      %p63 = scmp.ne.s32.totalorder %s52, %s53
      %p64 = scmp.eq.s32.totalorder %s26, 0
      %p65 = por %p63, %p64
      %p66 = scmp.ne.s32.totalorder %s52, %s53
      %p67 = scmp.eq.s32.totalorder %s27, 1
      %p68 = por %p66, %p67
      %p70 = scmp.ne.s32.totalorder %s53, %s69
      %p71 = scmp.eq.s32.totalorder %s27, 0
      %p72 = por %p70, %p71
      %s74 = sadd.s32 %s73, 1
      %p77 = scmp.eq.s32.totalorder %s21, 1
      %p78 = scmp.ne.s32.totalorder %s73, %s75
      %p79 = scmp.eq.s32.totalorder %s21, 0
      %p80 = por %p78, %p79
      %p81 = scmp.ne.s32.totalorder %s73, %s75
      %p82 = scmp.eq.s32.totalorder %s26, 1
      %p83 = por %p81, %p82
      %p84 = scmp.ne.s32.totalorder %s75, %s76
      %p85 = scmp.eq.s32.totalorder %s26, 0
      %p86 = por %p84, %p85
      %p87 = scmp.ne.s32.totalorder %s75, %s76
      %p88 = scmp.eq.s32.totalorder %s27, 1
      %p89 = por %p87, %p88
      %p91 = scmp.ne.s32.totalorder %s76, %s90
      %p92 = scmp.eq.s32.totalorder %s27, 0
      %p93 = por %p91, %p92
      %s95 = sadd.s32 %s94, 1
      %p98 = scmp.eq.s32.totalorder %s21, 1
      %p99 = scmp.ne.s32.totalorder %s94, %s96
      %p100 = scmp.eq.s32.totalorder %s21, 0
      %p101 = por %p99, %p100
      %p102 = scmp.ne.s32.totalorder %s94, %s96
      %p103 = scmp.eq.s32.totalorder %s26, 1
      %p104 = por %p102, %p103
      %p105 = scmp.ne.s32.totalorder %s96, %s97
      %p106 = scmp.eq.s32.totalorder %s26, 0
      %p107 = por %p105, %p106
      %p108 = scmp.ne.s32.totalorder %s96, %s97
      %p109 = scmp.eq.s32.totalorder %s27, 1
      %p110 = por %p108, %p109
      %p112 = scmp.ne.s32.totalorder %s97, %s111
      %p113 = scmp.eq.s32.totalorder %s27, 0
      %p114 = por %p112, %p113
      %s115 = ssub.s32 %s28, %s40
      %p116 = scmp.eq.s32.totalorder %s115, 0
      %s118 = sadd.s32 %s117, 1
      %s119 = scalar_select %p116, %s117, %s118
      %p122 = pneg %p116
      %p123 = scmp.eq.s32.totalorder %s21, 1
      %p124 = por %p122, %p123
      %p125 = scmp.ne.s32.totalorder %s117, %s120
      %p126 = scmp.eq.s32.totalorder %s21, 0
      %p127 = por %p125, %p126
      %p128 = scmp.ne.s32.totalorder %s117, %s120
      %p129 = scmp.eq.s32.totalorder %s26, 1
      %p130 = por %p128, %p129
      %p131 = scmp.ne.s32.totalorder %s120, %s121
      %p132 = scmp.eq.s32.totalorder %s26, 0
      %p133 = por %p131, %p132
      %p134 = scmp.ne.s32.totalorder %s120, %s121
      %p135 = scmp.eq.s32.totalorder %s27, 1
      %p136 = por %p134, %p135
      %p138 = scmp.ne.s32.totalorder %s121, %s137
      %p139 = scmp.eq.s32.totalorder %s27, 0
      %p140 = por %p138, %p139
      %s141 = ssub.s32 %s28, %s40
      %p142 = scmp.eq.s32.totalorder %s141, 0
      %s144 = sadd.s32 %s143, 1
      %s145 = scalar_select %p142, %s143, %s144
      %p148 = pneg %p142
      %p149 = scmp.eq.s32.totalorder %s21, 1
      %p150 = por %p148, %p149
      %p151 = scmp.ne.s32.totalorder %s143, %s146
      %p152 = scmp.eq.s32.totalorder %s21, 0
      %p153 = por %p151, %p152
      %p154 = scmp.ne.s32.totalorder %s143, %s146
      %p155 = scmp.eq.s32.totalorder %s26, 1
      %p156 = por %p154, %p155
      %p157 = scmp.ne.s32.totalorder %s146, %s147
      %p158 = scmp.eq.s32.totalorder %s26, 0
      %p159 = por %p157, %p158
      %p160 = scmp.ne.s32.totalorder %s146, %s147
      %p161 = scmp.eq.s32.totalorder %s27, 1
      %p162 = por %p160, %p161
      %p164 = scmp.ne.s32.totalorder %s147, %s163
      %p165 = scmp.eq.s32.totalorder %s27, 0
      %p166 = por %p164, %p165
      %s167 = ssub.s32 %s29, %s36
      %s168 = ssub.s32 %s28, %s40
      %s169 = sor.u32 %s167, %s168
      %p170 = scmp.eq.s32.totalorder %s169, 0
      %s172 = sadd.s32 %s171, 1
      %s173 = scalar_select %p170, %s171, %s172
      %p176 = pneg %p170
      %p177 = scmp.eq.s32.totalorder %s21, 1
      %p178 = por %p176, %p177
      %p179 = scmp.ne.s32.totalorder %s171, %s174
      %p180 = scmp.eq.s32.totalorder %s21, 0
      %p181 = por %p179, %p180
      %p182 = scmp.ne.s32.totalorder %s171, %s174
      %p183 = scmp.eq.s32.totalorder %s26, 1
      %p184 = por %p182, %p183
      %p185 = scmp.ne.s32.totalorder %s174, %s175
      %p186 = scmp.eq.s32.totalorder %s26, 0
      %p187 = por %p185, %p186
      %p188 = scmp.ne.s32.totalorder %s174, %s175
      %p189 = scmp.eq.s32.totalorder %s27, 1
      %p190 = por %p188, %p189
      %p192 = scmp.ne.s32.totalorder %s175, %s191
      %p193 = scmp.eq.s32.totalorder %s27, 0
      %p194 = por %p192, %p193
      %p195 = scmp.le.s32.totalorder 1, %s21
      %p196 = scmp.lt.s32.totalorder %s21, 3
      %p197 = pnand %p195, %p196
      %p198 = pneg %p197
      // Predicated region
      $region9: #{tpu_custom_call.1} parent=5 // pred_check
        _
      $region10: #{tpu_custom_call.1} parent=5 // pred_check_branch
        %200 = sbr.rel (%p197) target = $region12
      $region11: #{tpu_custom_call.1} parent=5 // pred_region
        %s201 = ssub.s32 %s21, 1
        // Predicated region
        $region13: #{tpu_custom_call.1} parent=11 // pred_check
          %p202 = pneg %p86
        $region14: #{tpu_custom_call.1} parent=11 // pred_check_branch
          %204 = sbr.rel (%p202) target = $region16
        $region15: #{tpu_custom_call.1} parent=11 // pred_region
          _
        $region16: #{tpu_custom_call.1} parent=11 // pred_fallthru
          _
        // Predicated region
        $region17: #{tpu_custom_call.1} parent=11 // pred_check
          %p205 = pneg %p107
        $region18: #{tpu_custom_call.1} parent=11 // pred_check_branch
          %207 = sbr.rel (%p205) target = $region20
        $region19: #{tpu_custom_call.1} parent=11 // pred_region
          _
        $region20: #{tpu_custom_call.1} parent=11 // pred_fallthru
          _
        // Predicated region
        $region21: #{tpu_custom_call.1} parent=11 // pred_check
          %p208 = pneg %p133
        $region22: #{tpu_custom_call.1} parent=11 // pred_check_branch
          %210 = sbr.rel (%p208) target = $region24
        $region23: #{tpu_custom_call.1} parent=11 // pred_region
          %p211 = scmp.lt.s32.totalorder %s30, 0
          %s212 = scalar_select %p211, %s30, 0
          %s213 = smul.addr %s212, 8
          %s214 = scalar_lea.vmem %s4, %s213
        $region24: #{tpu_custom_call.1} parent=11 // pred_fallthru
          _
        // Predicated region
        $region25: #{tpu_custom_call.1} parent=11 // pred_check
          %p215 = pneg %p159
        $region26: #{tpu_custom_call.1} parent=11 // pred_check_branch
          %217 = sbr.rel (%p215) target = $region28
        $region27: #{tpu_custom_call.1} parent=11 // pred_region
          %p218 = scmp.lt.s32.totalorder %s30, 0
          %s219 = scalar_select %p218, %s30, 0
          %s220 = scalar_lea.vmem %s5, %s219
        $region28: #{tpu_custom_call.1} parent=11 // pred_fallthru
          _
      $region12: #{tpu_custom_call.1} parent=5 // pred_fallthru
        _
      %p221 = scmp.lt.s32.totalorder %s21, 2
      // Predicated region
      $region29: #{tpu_custom_call.1} parent=5 // pred_check
        %p222 = pneg %p221
      $region30: #{tpu_custom_call.1} parent=5 // pred_check_branch
        %224 = sbr.rel (%p222) target = $region32
      $region31: #{tpu_custom_call.1} parent=5 // pred_region
        // Predicated region
        $region33: #{tpu_custom_call.1} parent=31 // pred_check
          %p225 = pneg %p59
        $region34: #{tpu_custom_call.1} parent=31 // pred_check_branch
          %227 = sbr.rel (%p225) target = $region36
        $region35: #{tpu_custom_call.1} parent=31 // pred_region
          %s228 = smul.u32 %s29, 8
          %s229 = sld [smem:[#allocation3 + %s29]]
          %s230 = sadd.s32 %s228, %s229
          %p231 = scmp.lt.s32.totalorder %s230, 15
          %s232 = scalar_select %p231, %s230, 15
          %s233 = scalar_lea.vmem %s1, %s232
          %s234 = smul.u32 %s29, 8
          %s235 = sld [smem:[#allocation3 + %s29]]
          %s236 = sadd.s32 %s234, %s235
        $region36: #{tpu_custom_call.1} parent=31 // pred_fallthru
          _
      $region32: #{tpu_custom_call.1} parent=5 // pred_fallthru
        _
      %p237 = scmp.le.s32.totalorder 1, %s21
      %p238 = scmp.lt.s32.totalorder %s21, 3
      %p239 = pnand %p237, %p238
      %p240 = pneg %p239
      // Predicated region
      $region37: #{tpu_custom_call.1} parent=5 // pred_check
        _
      $region38: #{tpu_custom_call.1} parent=5 // pred_check_branch
        %242 = sbr.rel (%p239) target = $region40
      $region39: #{tpu_custom_call.1} parent=5 // pred_region
        %s243 = ssub.s32 %s21, 1
        %s244 = smul.u32 %s31, 8
        %s245 = sld [smem:[#allocation3 + %s31]]
        %s246 = sadd.s32 %s244, %s245
        %p247 = scmp.lt.s32.totalorder %s246, 15
        %s248 = scalar_select %p247, %s246, 15
        %s249 = scalar_lea.vmem %s1, %s248
        %p250 = pneg %p65
        %p251 = pneg %p62
        %p252 = pneg %p86
        %p253 = pneg %p83
        %p254 = pneg %p107
        %p255 = pneg %p104
        %p256 = scmp.lt.s32.totalorder %s30, 0
        %s257 = scalar_select %p256, %s30, 0
        %s258 = smul.addr %s257, 8
        %s259 = scalar_lea.vmem %s4, %s258
        %p260 = pneg %p133
        %p261 = pneg %p130
        %p262 = scmp.lt.s32.totalorder %s30, 0
        %s263 = scalar_select %p262, %s30, 0
        %s264 = scalar_lea.vmem %s5, %s263
        %p265 = pneg %p159
        %p266 = pneg %p156
        %p267 = pneg %p187
        %p268 = pneg %p184
        %s269 = sand.u32 %s174, 1
        %s270 = scalar_lea.sflag [#allocation5], %s269
        %s271 = sand.u32 %s174, 1
        %s272 = scalar_lea.vmem [#allocation4], %s271
        %s273 = smul.u32 %s31, 8
        %s274 = sld [smem:[#allocation3 + %s31]]
        %s275 = sadd.s32 %s273, %s274
        %p276 = scmp.lt.s32.totalorder %s275, 15
        %s277 = scalar_select %p276, %s275, 15
        %s278 = scalar_lea.vmem %s1, %s277
        %s279 = smul.u32 %s31, 8
        %s280 = sld [smem:[#allocation3 + %s31]]
        %s281 = sadd.s32 %s279, %s280
        %p282 = scmp.lt.s32.totalorder %s30, 0
        %s283 = scalar_select %p282, %s30, 0
        %s284 = smul.addr %s283, 8
        %s285 = scalar_lea.vmem %s4, %s284
        %p286 = scmp.lt.s32.totalorder %s30, 0
        %s287 = scalar_select %p286, %s30, 0
        %s288 = scalar_lea.vmem %s5, %s287
        %v289 = vld [vmem:[%s278] sm:$0x1]
        %v290 = vld [vmem:[%s2] sm:$0xff]
        %v291 = vld [vmem:[%s2 + $0x8] sm:$0xff]
        %v292 = vld [vmem:[%s2 + $0x10] sm:$0xff]
        %v293 = vld [vmem:[%s2 + $0x18] sm:$0xff]
        %v294 = vld [vmem:[%s3] sm:$0x1]
        %vm295 = vcmask 261120
        %v297 = vsel %vm295, %v289, 0
        %299 = vmatprep.subr.mxu0 0.0
        %300 = vmatpush1.msra.mxu0 0.0
        %301 = vmatprep.subr.mxu0 0.0
        %302 = vmatpush1.msra.mxu0 0.0
        %303 = vmatprep.subr.mxu0 0.0
        %304 = vmatpush1.msra.mxu0 0.0
        %305 = vmatprep.subr.mxu0 0.0
        %306 = vmatpush1.msra.mxu0 0.0
        %307 = vmatprep.subr.mxu0 0.0
        %308 = vmatpush1.msra.mxu0 0.0
        %309 = vmatprep.subr.mxu0 0.0
        %310 = vmatpush1.msra.mxu0 0.0
        %311 = vmatprep.subr.mxu0 0.0
        %312 = vmatpush1.msra.mxu0 0.0
        %313 = vmatprep.subr.mxu0 0.0
        %314 = vmatpush1.msra.mxu0 0.0
        %315 = vmatprep.subr.mxu0 0.0
        %316 = vmatpush1.msra.mxu0 0.0
        %317 = vmatprep.subr.mxu0 0.0
        %318 = vmatpush1.msra.mxu0 0.0
        %319 = vmatprep.subr.mxu0 0.0
        %320 = vmatpush1.msra.mxu0 0.0
        %321 = vmatprep.subr.mxu0 0.0
        %322 = vmatpush1.msra.mxu0 0.0
        %323 = vmatprep.subr.mxu0 0.0
        %324 = vmatpush1.msra.mxu0 %v293
        %325 = vmatprep.subr.mxu0 0.0
        %326 = vmatpush1.msra.mxu0 %v292
        %327 = vmatprep.subr.mxu0 0.0
        %328 = vmatpush1.msra.mxu0 %v291
        %329 = vmatprep.subr.mxu0 0.0
        %330 = vmatpush1.msra.mxu0 %v290
        %331 = vmatprep.subr.mxu0 0.0
        %332 = vmatpush2.msra.mxu0 0.0
        %333 = vmatprep.subr.mxu0 0.0
        %334 = vmatpush2.msra.mxu0 0.0
        %335 = vmatprep.subr.mxu0 0.0
        %336 = vmatpush2.msra.mxu0 0.0
        %337 = vmatprep.subr.mxu0 0.0
        %338 = vmatpush2.msra.mxu0 0.0
        %339 = vmatprep.subr.mxu0 0.0
        %340 = vmatpush2.msra.mxu0 0.0
        %341 = vmatprep.subr.mxu0 0.0
        %342 = vmatpush2.msra.mxu0 0.0
        %343 = vmatprep.subr.mxu0 0.0
        %344 = vmatpush2.msra.mxu0 0.0
        %345 = vmatprep.subr.mxu0 0.0
        %346 = vmatpush2.msra.mxu0 0.0
        %347 = vmatprep.subr.mxu0 0.0
        %348 = vmatpush2.msra.mxu0 0.0
        %349 = vmatprep.subr.mxu0 0.0
        %350 = vmatpush2.msra.mxu0 0.0
        %351 = vmatprep.subr.mxu0 0.0
        %352 = vmatpush2.msra.mxu0 0.0
        %353 = vmatprep.subr.mxu0 0.0
        %354 = vmatpush2.msra.mxu0 0.0
        %355 = vmatprep.subr.mxu0 0.0
        %356 = vmatpush2.msra.mxu0 0.0
        %357 = vmatprep.subr.mxu0 0.0
        %358 = vmatpush2.msra.mxu0 0.0
        %359 = vmatprep.subr.mxu0 0.0
        %360 = vmatpush2.msra.mxu0 0.0
        %361 = vmatprep.subr.mxu0 0.0
        %362 = vmatpush2.msra.mxu0 0.0
        %363 = vmatprep.mubr.f32.mxu0 0.0
        %364 = vmatmul.mubr.f32.gmra.mxu0 %v297
        %v365 = vpop.f32.mrf.mxu0
        %v366 = vadd.f32 %v294, %v365
        %v367 = vpop.f32.mrf.mxu0
        %368 = vdwg.mxu0
        %v369 = vmax.f32 %v366, 0.0
        %v370 = vld [vmem:[%s285] sm:$0xff]
        %v371 = vld [vmem:[%s285 + $0x8] sm:$0xff]
        %v372 = vld [vmem:[%s288] sm:$0x1]
        %vm373 = vcmask 130048
        %v375 = vsel %vm373, %v369, 0
        %377 = vmatprep.subr.mxu0 0.0
        %378 = vmatpush1.msra.mxu0 0.0
        %379 = vmatprep.subr.mxu0 0.0
        %380 = vmatpush1.msra.mxu0 0.0
        %381 = vmatprep.subr.mxu0 0.0
        %382 = vmatpush1.msra.mxu0 0.0
        %383 = vmatprep.subr.mxu0 0.0
        %384 = vmatpush1.msra.mxu0 0.0
        %385 = vmatprep.subr.mxu0 0.0
        %386 = vmatpush1.msra.mxu0 0.0
        %387 = vmatprep.subr.mxu0 0.0
        %388 = vmatpush1.msra.mxu0 0.0
        %389 = vmatprep.subr.mxu0 0.0
        %390 = vmatpush1.msra.mxu0 0.0
        %391 = vmatprep.subr.mxu0 0.0
        %392 = vmatpush1.msra.mxu0 0.0
        %393 = vmatprep.subr.mxu0 0.0
        %394 = vmatpush1.msra.mxu0 0.0
        %395 = vmatprep.subr.mxu0 0.0
        %396 = vmatpush1.msra.mxu0 0.0
        %397 = vmatprep.subr.mxu0 0.0
        %398 = vmatpush1.msra.mxu0 0.0
        %399 = vmatprep.subr.mxu0 0.0
        %400 = vmatpush1.msra.mxu0 0.0
        %401 = vmatprep.subr.mxu0 0.0
        %402 = vmatpush1.msra.mxu0 0.0
        %403 = vmatprep.subr.mxu0 0.0
        %404 = vmatpush1.msra.mxu0 0.0
        %405 = vmatprep.subr.mxu0 0.0
        %406 = vmatpush1.msra.mxu0 %v371
        %407 = vmatprep.subr.mxu0 0.0
        %408 = vmatpush1.msra.mxu0 %v370
        %409 = vmatprep.subr.mxu0 0.0
        %410 = vmatpush2.msra.mxu0 0.0
        %411 = vmatprep.subr.mxu0 0.0
        %412 = vmatpush2.msra.mxu0 0.0
        %413 = vmatprep.subr.mxu0 0.0
        %414 = vmatpush2.msra.mxu0 0.0
        %415 = vmatprep.subr.mxu0 0.0
        %416 = vmatpush2.msra.mxu0 0.0
        %417 = vmatprep.subr.mxu0 0.0
        %418 = vmatpush2.msra.mxu0 0.0
        %419 = vmatprep.subr.mxu0 0.0
        %420 = vmatpush2.msra.mxu0 0.0
        %421 = vmatprep.subr.mxu0 0.0
        %422 = vmatpush2.msra.mxu0 0.0
        %423 = vmatprep.subr.mxu0 0.0
        %424 = vmatpush2.msra.mxu0 0.0
        %425 = vmatprep.subr.mxu0 0.0
        %426 = vmatpush2.msra.mxu0 0.0
        %427 = vmatprep.subr.mxu0 0.0
        %428 = vmatpush2.msra.mxu0 0.0
        %429 = vmatprep.subr.mxu0 0.0
        %430 = vmatpush2.msra.mxu0 0.0
        %431 = vmatprep.subr.mxu0 0.0
        %432 = vmatpush2.msra.mxu0 0.0
        %433 = vmatprep.subr.mxu0 0.0
        %434 = vmatpush2.msra.mxu0 0.0
        %435 = vmatprep.subr.mxu0 0.0
        %436 = vmatpush2.msra.mxu0 0.0
        %437 = vmatprep.subr.mxu0 0.0
        %438 = vmatpush2.msra.mxu0 0.0
        %439 = vmatprep.subr.mxu0 0.0
        %440 = vmatpush2.msra.mxu0 0.0
        %441 = vmatprep.mubr.f32.mxu0 0.0
        %442 = vmatmul.mubr.f32.gmra.mxu0 %v375
        %v443 = vpop.f32.mrf.mxu0
        %v444 = vadd.f32 %v372, %v443
        %v445 = vpop.f32.mrf.mxu0
        %446 = vdwg.mxu0
        %447 = vst [vmem:[%s272] sm:$0x1] %v444
        %s448 = sand.u32 %s174, 1
        %s449 = scalar_lea.sflag [#allocation5], %s448
        %s450 = sand.u32 %s174, 1
        %s451 = scalar_lea.vmem [#allocation4], %s450
        // Predicated region
        $region41: #{tpu_custom_call.1} parent=39 // pred_check
          %p452 = pneg %p184
        $region42: #{tpu_custom_call.1} parent=39 // pred_check_branch
          %454 = sbr.rel (%p452) target = $region44
        $region43: #{tpu_custom_call.1} parent=39 // pred_region
          %s456 = ssub.s32 16, 16
          %457 = vsyncadd %s449, %s456
          %s458 = sadd.s32 %s30, %s31
          %s459 = smul.addr %s458, 16
          %s460 = scalar_lea.hbm %s6, %s459
          %s462 = sshll.u32 %s451, 4
          %s463 = int_to_ptr.vmem [resolvable:$true] %s462
          %465 = dma.vmem_to_hbm [thread:$0]  %s463, 16, %s460, %s449
        $region44: #{tpu_custom_call.1} parent=39 // pred_fallthru
          _
      $region40: #{tpu_custom_call.1} parent=5 // pred_fallthru
        _
      %p466 = scmp.le.s32.totalorder 2, %s21
      // Predicated region
      $region45: #{tpu_custom_call.1} parent=5 // pred_check
        %p467 = pneg %p466
      $region46: #{tpu_custom_call.1} parent=5 // pred_check_branch
        %469 = sbr.rel (%p467) target = $region48
      $region47: #{tpu_custom_call.1} parent=5 // pred_region
        %s470 = ssub.s32 %s21, 2
        // Predicated region
        $region49: #{tpu_custom_call.1} parent=47 // pred_check
          %p471 = pneg %p190
        $region50: #{tpu_custom_call.1} parent=47 // pred_check_branch
          %473 = sbr.rel (%p471) target = $region52
        $region51: #{tpu_custom_call.1} parent=47 // pred_region
          %s474 = sand.u32 %s175, 1
          %s475 = scalar_lea.sflag [#allocation5], %s474
          %s476 = sand.u32 %s175, 1
          %s477 = scalar_lea.vmem [#allocation4], %s476
          %478 = dma.done %s475, 16
        $region52: #{tpu_custom_call.1} parent=47 // pred_fallthru
          _
      $region48: #{tpu_custom_call.1} parent=5 // pred_fallthru
        _
    $region6: #{tpu_custom_call.1} parent=1 // loop_footer
      %s25 = sadd.s32 1, %s21
    $region7: #{tpu_custom_call.1} parent=1 // loop_footer_branch
      %20 = sbr.rel target = $region3
    $region8: #{tpu_custom_call.1} parent=1 // loop_exit
      _
    %479 = vsyncpa [#allocation5], 1
    %s480 = scalar_lea.sflag [#allocation5], 1
    %481 = vsyncpa %s480, 1

</llo_original>
